<compile_context>
chip_gen: v7x
topology: tpu7x:2x2x1
jax: 0.10.0
libtpu: 0.0.40
codegen_flags: <defaults>
</compile_context>

<pallas_src>
import jax
import jax.numpy as jnp
from jax.experimental import pallas as pl
from jax.experimental.pallas import tpu as pltpu


def _matmul_kernel(z_ref, w_ref, o_ref):
    # z_ref: (TR, Cin)  bf16 -- BN+ReLU+2x2-sum-pooled activations, channels-last
    # w_ref: (Cin, Cout) bf16 -- conv1x1 weight^T with the 1/4 pool factor folded in
    # o_ref: (TR, Cout)  f32
    o_ref[...] = jnp.dot(
        z_ref[...], w_ref[...], preferred_element_type=jnp.float32
    ).astype(o_ref.dtype)


def _round_up(x, m):
    return ((x + m - 1) // m) * m


def _vmem_limit_bytes():
    try:
        cap = int(pltpu.get_tpu_info().vmem_capacity_bytes)
    except Exception:
        cap = 64 << 20  # conservative fallback: v7x has 64 MiB per TensorCore
    return max(16 << 20, min(int(0.75 * cap), 96 << 20))


def _choose_row_tile(M, Cin, Cout, w_bytes, vmem_limit):
    """Rows per block: multiple of 8, sized so the double-buffered bf16 input block,
    double-buffered f32 output block and the (possibly double-buffered) weight all
    fit comfortably inside vmem_limit.  Also keeps the grid >= ~4 deep when there
    is enough work (pipelining + the 2-TensorCore split on v7x)."""
    usable = vmem_limit - 2 * w_bytes - (2 << 20)     # headroom for Mosaic internals
    per_row = 2 * Cin * 2 + 2 * Cout * 4              # 2x bf16 in-buf + 2x f32 out-buf
    cap = max(8, usable // per_row)
    if M >= 32:
        cap = min(cap, max(8, _round_up((M + 3) // 4, 8)))
    tr = min(cap, _round_up(M, 8), 8192)
    return max(8, (tr // 8) * 8)


def transition_forward(x_nchw, gamma, beta, conv_w, eps=1e-5,
                       channels_last_output=False):
    """x_nchw: (N, Cin, H, W) float32. conv_w: (Cout, Cin) (1x1 kernel squeezed)."""
    N, Cin, H, W = x_nchw.shape
    Cout = conv_w.shape[0]
    assert H % 2 == 0 and W % 2 == 0, "AvgPool2d(2,2) path assumes even H, W"
    Ho, Wo = H // 2, W // 2
    M = N * Ho * Wo

    x_f32 = x_nchw.astype(jnp.float32)

    # --- BN batch statistics: single fused reduction pass (sum + sum of squares) ---
    cnt = N * H * W
    s1 = jnp.sum(x_f32, axis=(0, 2, 3))
    s2 = jnp.sum(x_f32 * x_f32, axis=(0, 2, 3))
    mean = s1 / cnt
    var = jnp.maximum(s2 / cnt - mean * mean, 0.0)    # biased var (BN training fwd)
    scale = gamma.astype(jnp.float32) * jax.lax.rsqrt(var + eps)
    bias = beta.astype(jnp.float32) - mean * scale

    # --- fused pass: BN + ReLU + 2x2 window-sum + channels-last, stored as bf16 ---
    y = jnp.maximum(x_f32 * scale[None, :, None, None] + bias[None, :, None, None], 0.0)
    y = y.reshape(N, Cin, Ho, 2, Wo, 2).sum(axis=(3, 5))   # (N, Cin, Ho, Wo) 2x2 sum
    y = y.astype(jnp.bfloat16)                              # halve transpose/DMA bytes
    z = jnp.transpose(y, (0, 2, 3, 1)).reshape(M, Cin)      # (M, Cin) channels-last

    # --- 1/4 avg-pool factor folded into the transposed conv weight; bf16 for MXU ---
    w_t = (jnp.transpose(conv_w).astype(jnp.float32) * 0.25).astype(jnp.bfloat16)
    w_bytes = Cin * Cout * 2

    vmem_limit = _vmem_limit_bytes()
    TR = _choose_row_tile(M, Cin, Cout, w_bytes, vmem_limit)
    Mp = _round_up(M, TR)
    if Mp != M:
        z = jnp.pad(z, ((0, Mp - M), (0, 0)))               # padded rows dropped below

    cost = pl.CostEstimate(
        flops=2 * Mp * Cin * Cout,
        transcendentals=0,
        bytes_accessed=Mp * Cin * 2 + Cin * Cout * 2 + Mp * Cout * 4,
    )

    # NOTE: Cout is the output lane dim -- lane-dense for real DenseNet transitions
    # (Cout in {128,256,512}); tiny demo channels just lane-pad (correct, wasteful).
    out = pl.pallas_call(
        _matmul_kernel,
        out_shape=jax.ShapeDtypeStruct((Mp, Cout), jnp.float32),
        grid_spec=pltpu.PrefetchScalarGridSpec(
            num_scalar_prefetch=0,
            grid=(Mp // TR,),
            in_specs=[
                pl.BlockSpec((TR, Cin), lambda i: (i, 0)),
                pl.BlockSpec((Cin, Cout), lambda i: (0, 0)),
            ],
            out_specs=pl.BlockSpec((TR, Cout), lambda i: (i, 0)),
        ),
        compiler_params=pltpu.CompilerParams(
            dimension_semantics=("parallel",),
            vmem_limit_bytes=vmem_limit,
        ),
        cost_estimate=cost,
    )(z, w_t)

    out = out[:M].reshape(N, Ho, Wo, Cout)
    if channels_last_output:
        return out                                # skip the final transpose if caller allows
    return jnp.transpose(out, (0, 3, 1, 2))       # NCHW to match the PyTorch module


def transition_reference(x_nchw, gamma, beta, conv_w, eps=1e-5):
    """Pure-JAX reference mirroring the PyTorch forward (training-mode BN)."""
    mean = jnp.mean(x_nchw, axis=(0, 2, 3))
    var = jnp.var(x_nchw, axis=(0, 2, 3))
    xn = (x_nchw - mean[None, :, None, None]) / jnp.sqrt(var + eps)[None, :, None, None]
    y = gamma[None, :, None, None] * xn + beta[None, :, None, None]
    y = jnp.maximum(y, 0.0)
    y = jnp.einsum("nchw,oc->nohw", y, conv_w)              # 1x1 conv, no bias
    N, Co, H, W = y.shape
    y = y.reshape(N, Co, H // 2, 2, W // 2, 2).mean(axis=(3, 5))
    return y


if __name__ == "__main__":
    key = jax.random.PRNGKey(0)
    k_x, k_w, k_g, k_b = jax.random.split(key, 4)

    N, Cin, H, W = 2, 8, 16, 16
    Cout = Cin // 2  # DenseNet transition halves channels

    x = jax.random.normal(k_x, (N, Cin, H, W), dtype=jnp.float32)
    conv_w = jax.random.normal(k_w, (Cout, Cin), dtype=jnp.float32) * 0.1
    gamma = 1.0 + 0.1 * jax.random.normal(k_g, (Cin,), dtype=jnp.float32)
    beta = 0.1 * jax.random.normal(k_b, (Cin,), dtype=jnp.float32)

    out = transition_forward(x, gamma, beta, conv_w)
    out = jax.block_until_ready(out)

    ref = transition_reference(x, gamma, beta, conv_w)
    assert out.shape == (N, Cout, H // 2, W // 2), out.shape
    # bf16 intermediate + bf16 MXU operands with f32 accumulation -> loosened tolerance.
    assert jnp.allclose(out, ref, rtol=2e-2, atol=1e-2), float(
        jnp.max(jnp.abs(out - ref))
    )
    print("KERNEL_OK")
</pallas_src>

<mosaic_0001>
module attributes {stable_mosaic.version = 11 : i64} {
  func.func @_matmul_kernel(%arg0: i32, %arg1: memref<32x8xbf16, #tpu.memory_space<vmem>>, %arg2: memref<8x4xbf16, #tpu.memory_space<vmem>>, %arg3: memref<32x4xf32, #tpu.memory_space<vmem>>) attributes {dimension_semantics = [#tpu.dimension_semantics<parallel>], iteration_bounds = array<i64: 4>, scalar_prefetch = 0 : i64, scratch_operands = 0 : i64, tpu.core_type = #tpu.core_type<tc>, window_params = [{transform_indices = @transform_0, window_bounds = array<i64: 32, 8>}, {pipeline_mode = #tpu.pipeline_mode<synchronous>, transform_indices = @transform_1, window_bounds = array<i64: 8, 4>}, {transform_indices = @transform_2, window_bounds = array<i64: 32, 4>}]} {
    %c0 = arith.constant 0 : index
    %c0_0 = arith.constant 0 : index
    %0 = vector.load %arg1[%c0, %c0_0] : memref<32x8xbf16, #tpu.memory_space<vmem>>, vector<32x8xbf16>
    %c0_1 = arith.constant 0 : index
    %c0_2 = arith.constant 0 : index
    %1 = vector.load %arg2[%c0_1, %c0_2] : memref<8x4xbf16, #tpu.memory_space<vmem>>, vector<8x4xbf16>
    %cst = arith.constant dense<0.000000e+00> : vector<32x4xf32>
    %2 = tpu.matmul %0, %1, %cst {dimension_numbers = #tpu.dot_dimension_numbers<[1], [0], [0], [1], [0, 0, 1, 1], [], []>} : vector<32x8xbf16>, vector<8x4xbf16>, vector<32x4xf32> -> vector<32x4xf32>
    %c0_3 = arith.constant 0 : index
    %c0_4 = arith.constant 0 : index
    %3 = vector.load %arg3[%c0_3, %c0_4] : memref<32x4xf32, #tpu.memory_space<vmem>>, vector<32x4xf32>
    tpu.vector_store %arg3[%c0_3, %c0_4], %2 {strides = array<i32>} : memref<32x4xf32, #tpu.memory_space<vmem>>, vector<32x4xf32>,
    return
  }
  func.func @transform_0(%arg0: i32) -> (i32, i32) {
    %c0_i32 = arith.constant 0 : i32
    %c0_i32_0 = arith.constant 0 : i32
    return %arg0, %c0_i32 : i32, i32
  }
  func.func @transform_1(%arg0: i32) -> (i32, i32) {
    %c0_i32 = arith.constant 0 : i32
    %c0_i32_0 = arith.constant 0 : i32
    %c0_i32_1 = arith.constant 0 : i32
    return %c0_i32, %c0_i32_0 : i32, i32
  }
  func.func @transform_2(%arg0: i32) -> (i32, i32) {
    %c0_i32 = arith.constant 0 : i32
    %c0_i32_0 = arith.constant 0 : i32
    return %arg0, %c0_i32 : i32, i32
  }
}

</mosaic_0001>

<llo_original>
// kernel: tpu_custom_call.1
$region0: #{tpu_custom_call.1}
  #allocation0 [shape = 'u32[]', space=smem, size = 0x4, offset = 0x4, fixed_abs, tag = 'smem constant byte address 0x4 - core index']
  #allocation1 [shape = 'u32[144,128]{1,0:T(1,128)}', space=vmem, size = 0x12000, scoped, tag = 'internal scratch']
  %s0 = inlined_call_operand.vmem [shape: bf16[128,8], index: 0, kind: input, shape index: {}]
  %s1 = inlined_call_operand.vmem [shape: bf16[8,4], index: 1, kind: input, shape index: {}]
  %s2 = inlined_call_operand.vmem [shape: f32[128,4], index: 2, kind: output, shape index: {}]
  %s3 = sld [smem:[#allocation0]]
  $region41: #{tpu_custom_call.1} parent=0
    _
  %s5 = ssub.s32 1, %s3
  %s6 = scalar_select 0, %s5, %s3
  loop: start=0, step=1, limit=6
  $region2: #{tpu_custom_call.1} parent=0 // loop_pre_header
    _
  $region3: #{tpu_custom_call.1} parent=0 // loop_header
    %s8 = sphi 0, %s12
    %p9 = scmp.ge.s32.totalorder %s8, 6
    %s18 = sphi 0, %s20
    %s21 = sphi 0, %s18
    %s22 = sphi 0, %s21
    %s38 = sphi 0, %s22
    %s42 = sphi 0, %s42
    %s44 = sphi 0, %s42
    %s45 = sphi 0, %s44
    %s59 = sphi 0, %s45
    %s65 = sphi 0, %s67
    %s68 = sphi 0, %s65
    %s69 = sphi 0, %s68
    %s85 = sphi 0, %s69
  $region4: #{tpu_custom_call.1} parent=0 // loop_header_branch
    %11 = sbr.rel (%p9) target = $region8
  $region5: #{tpu_custom_call.1} parent=0 // loop_body
    %s13 = ssub.s32 %s8, 1
    %s14 = ssub.s32 %s8, 2
    %s15 = sadd.s32 %s8, 1
    %s16 = ssub.s32 %s8, %s15
    %p17 = scmp.eq.s32.totalorder %s16, 0
    %s19 = sadd.s32 %s18, 1
    %s20 = scalar_select %p17, %s18, %s19
    %p23 = pneg %p17
    %p24 = scmp.eq.s32.totalorder %s8, 3
    %p25 = por %p23, %p24
    %p26 = scmp.ne.s32.totalorder %s18, %s21
    %p27 = scmp.eq.s32.totalorder %s8, 0
    %p28 = por %p26, %p27
    %p29 = scmp.ne.s32.totalorder %s18, %s21
    %p30 = scmp.eq.s32.totalorder %s13, 3
    %p31 = por %p29, %p30
    %p32 = scmp.ne.s32.totalorder %s21, %s22
    %p33 = scmp.eq.s32.totalorder %s13, 0
    %p34 = por %p32, %p33
    %p35 = scmp.ne.s32.totalorder %s21, %s22
    %p36 = scmp.eq.s32.totalorder %s14, 3
    %p37 = por %p35, %p36
    %p39 = scmp.ne.s32.totalorder %s22, %s38
    %p40 = scmp.eq.s32.totalorder %s14, 0
    %p41 = por %p39, %p40
    %s43 = sadd.s32 %s42, 1
    %p46 = scmp.eq.s32.totalorder %s8, 3
    %p47 = scmp.ne.s32.totalorder %s42, %s44
    %p48 = scmp.eq.s32.totalorder %s8, 0
    %p49 = por %p47, %p48
    %p50 = scmp.ne.s32.totalorder %s42, %s44
    %p51 = scmp.eq.s32.totalorder %s13, 3
    %p52 = por %p50, %p51
    %p53 = scmp.ne.s32.totalorder %s44, %s45
    %p54 = scmp.eq.s32.totalorder %s13, 0
    %p55 = por %p53, %p54
    %p56 = scmp.ne.s32.totalorder %s44, %s45
    %p57 = scmp.eq.s32.totalorder %s14, 3
    %p58 = por %p56, %p57
    %p60 = scmp.ne.s32.totalorder %s45, %s59
    %p61 = scmp.eq.s32.totalorder %s14, 0
    %p62 = por %p60, %p61
    %s63 = ssub.s32 %s8, %s15
    %p64 = scmp.eq.s32.totalorder %s63, 0
    %s66 = sadd.s32 %s65, 1
    %s67 = scalar_select %p64, %s65, %s66
    %p70 = pneg %p64
    %p71 = scmp.eq.s32.totalorder %s8, 3
    %p72 = por %p70, %p71
    %p73 = scmp.ne.s32.totalorder %s65, %s68
    %p74 = scmp.eq.s32.totalorder %s8, 0
    %p75 = por %p73, %p74
    %p76 = scmp.ne.s32.totalorder %s65, %s68
    %p77 = scmp.eq.s32.totalorder %s13, 3
    %p78 = por %p76, %p77
    %p79 = scmp.ne.s32.totalorder %s68, %s69
    %p80 = scmp.eq.s32.totalorder %s13, 0
    %p81 = por %p79, %p80
    %p82 = scmp.ne.s32.totalorder %s68, %s69
    %p83 = scmp.eq.s32.totalorder %s14, 3
    %p84 = por %p82, %p83
    %p86 = scmp.ne.s32.totalorder %s69, %s85
    %p87 = scmp.eq.s32.totalorder %s14, 0
    %p88 = por %p86, %p87
    %p89 = scmp.le.s32.totalorder 1, %s8
    %p90 = scmp.lt.s32.totalorder %s8, 5
    %p91 = pnand %p89, %p90
    %p92 = pneg %p91
    // Predicated region
    $region9: #{tpu_custom_call.1} parent=5 // pred_check
      _
    $region10: #{tpu_custom_call.1} parent=5 // pred_check_branch
      %94 = sbr.rel (%p91) target = $region12
    $region11: #{tpu_custom_call.1} parent=5 // pred_region
      %s95 = ssub.s32 %s8, 1
      // Predicated region
      $region13: #{tpu_custom_call.1} parent=11 // pred_check
        %p96 = pneg %p55
      $region14: #{tpu_custom_call.1} parent=11 // pred_check_branch
        %98 = sbr.rel (%p96) target = $region16
      $region15: #{tpu_custom_call.1} parent=11 // pred_region
        _
      $region16: #{tpu_custom_call.1} parent=11 // pred_fallthru
        _
    $region12: #{tpu_custom_call.1} parent=5 // pred_fallthru
      _
    %p99 = scmp.lt.s32.totalorder %s8, 4
    // Predicated region
    $region17: #{tpu_custom_call.1} parent=5 // pred_check
      %p100 = pneg %p99
    $region18: #{tpu_custom_call.1} parent=5 // pred_check_branch
      %102 = sbr.rel (%p100) target = $region20
    $region19: #{tpu_custom_call.1} parent=5 // pred_region
      // Predicated region
      $region21: #{tpu_custom_call.1} parent=19 // pred_check
        %p103 = pneg %p28
      $region22: #{tpu_custom_call.1} parent=19 // pred_check_branch
        %105 = sbr.rel (%p103) target = $region24
      $region23: #{tpu_custom_call.1} parent=19 // pred_region
        %s106 = smul.u32 4, %s8
        %p107 = scmp.lt.s32.totalorder %s106, 15
        %s108 = scalar_select %p107, %s106, 15
        %s109 = smul.addr %s108, 4
        %s110 = scalar_lea.vmem %s0, %s109
        %s111 = smul.u32 4, %s8
      $region24: #{tpu_custom_call.1} parent=19 // pred_fallthru
        _
    $region20: #{tpu_custom_call.1} parent=5 // pred_fallthru
      _
    %p112 = scmp.le.s32.totalorder 1, %s8
    %p113 = scmp.lt.s32.totalorder %s8, 5
    %p114 = pnand %p112, %p113
    %p115 = pneg %p114
    // Predicated region
    $region25: #{tpu_custom_call.1} parent=5 // pred_check
      _
    $region26: #{tpu_custom_call.1} parent=5 // pred_check_branch
      %117 = sbr.rel (%p114) target = $region28
    $region27: #{tpu_custom_call.1} parent=5 // pred_region
      %s118 = ssub.s32 %s8, 1
      %s119 = smul.u32 4, %s13
      %p120 = scmp.lt.s32.totalorder %s119, 15
      %s121 = scalar_select %p120, %s119, 15
      %s122 = smul.addr %s121, 4
      %s123 = scalar_lea.vmem %s0, %s122
      %p124 = pneg %p34
      %p125 = pneg %p31
      %p126 = pneg %p55
      %p127 = pneg %p52
      %p128 = pneg %p81
      %p129 = pneg %p78
      %s130 = smul.u32 4, %s13
      %p131 = scmp.lt.s32.totalorder %s130, 15
      %s132 = scalar_select %p131, %s130, 15
      %s133 = smul.addr %s132, 8
      %s134 = scalar_lea.vmem %s2, %s133
      %s135 = smul.u32 4, %s13
      %p136 = scmp.lt.s32.totalorder %s135, 15
      %s137 = scalar_select %p136, %s135, 15
      %s138 = smul.addr %s137, 4
      %s139 = scalar_lea.vmem %s0, %s138
      %s140 = smul.u32 4, %s13
      %s141 = smul.u32 4, %s13
      %p142 = scmp.lt.s32.totalorder %s141, 15
      %s143 = scalar_select %p142, %s141, 15
      %s144 = smul.addr %s143, 8
      %s145 = scalar_lea.vmem %s2, %s144
      %s146 = smul.u32 4, %s13
      %v148 = vld [vmem:[%s139] sm:$0xf]
      %v149 = vld [vmem:[%s139 + $0x4] sm:$0xf]
      %v150 = vld [vmem:[%s139 + $0x8] sm:$0xf]
      %v151 = vld [vmem:[%s139 + $0xc] sm:$0xf]
      %v152 = vld [vmem:[%s1] sm:$0xf]
      %v157 = vunpack.c.l.b16 %v148
      %v158 = vunpack.c.l.b16 %v149
      %v159 = vunpack.c.l.b16 %v150
      %v160 = vunpack.c.l.b16 %v151
      %v161 = vpack.c.b16 %v158, %v157
      %v162 = vpack.c.b16 %v160, %v159
      %vm163 = vcmask 64512
      %v165 = vsel %vm163, %v161, 0
      %v168 = vsel %vm163, %v162, 0
      %vm170 = vcmask 1043456
      %v172 = vsel %vm170, %v152, 0
      %174 = vmatprep.subr.bf16.mxu0 0
      %175 = vmatpush1.bf16.msra.mxu0 %v172
      %176 = vmatprep.subr.bf16.mxu0 0
      %177 = vmatpush1.bf16.msra.mxu0 0
      %178 = vmatprep.subr.bf16.mxu0 0
      %179 = vmatpush1.bf16.msra.mxu0 0
      %180 = vmatprep.subr.bf16.mxu0 0
      %181 = vmatpush1.bf16.msra.mxu0 0
      %182 = vmatprep.subr.bf16.mxu0 0
      %183 = vmatpush1.bf16.msra.mxu0 0
      %184 = vmatprep.subr.bf16.mxu0 0
      %185 = vmatpush1.bf16.msra.mxu0 0
      %186 = vmatprep.subr.bf16.mxu0 0
      %187 = vmatpush1.bf16.msra.mxu0 0
      %188 = vmatprep.subr.bf16.mxu0 0
      %189 = vmatpush1.bf16.msra.mxu0 0
      %190 = vmatprep.subr.bf16.mxu0 0
      %191 = vmatpush1.bf16.msra.mxu0 0
      %192 = vmatprep.subr.bf16.mxu0 0
      %193 = vmatpush1.bf16.msra.mxu0 0
      %194 = vmatprep.subr.bf16.mxu0 0
      %195 = vmatpush1.bf16.msra.mxu0 0
      %196 = vmatprep.subr.bf16.mxu0 0
      %197 = vmatpush1.bf16.msra.mxu0 0
      %198 = vmatprep.subr.bf16.mxu0 0
      %199 = vmatpush1.bf16.msra.mxu0 0
      %200 = vmatprep.subr.bf16.mxu0 0
      %201 = vmatpush1.bf16.msra.mxu0 0
      %202 = vmatprep.subr.bf16.mxu0 0
      %203 = vmatpush1.bf16.msra.mxu0 0
      %204 = vmatprep.subr.bf16.mxu0 0
      %205 = vmatpush1.bf16.msra.mxu0 0
      %206 = vmatprep.mubr.bf16.mxu0 0
      %207 = vmatmul.mubr.bf16.gmra.mrb[0].mxu0 %v165
      %v208 = vpop.f32.mrb[0].mxu0
      %v209 = vadd.f32 0.0, %v208
      %v210 = vpop.f32.mrb[0].mxu0
      %v211 = vpop.f32.mrb[0].mxu0
      %v212 = vadd.f32 0.0, %v211
      %v213 = vpop.f32.mrb[0].mxu0
      %214 = vmatprep.mubr.bf16.mxu0 0
      %215 = vmatmul.mubr.bf16.gmra.mrb[0].mxu0 %v168
      %v216 = vpop.f32.mrb[0].mxu0
      %v217 = vadd.f32 0.0, %v216
      %v218 = vpop.f32.mrb[0].mxu0
      %v219 = vpop.f32.mrb[0].mxu0
      %v220 = vadd.f32 0.0, %v219
      %v221 = vpop.f32.mrb[0].mxu0
      %222 = vdwg.mxu0
      %vm223 = vcmask 31744
      %224 = vst.msk [vmem:[%s145] sm:$0xff] %vm223, %v209
      %225 = vst.msk [vmem:[%s145 + $0x8] sm:$0xff] %vm223, %v212
      %226 = vst.msk [vmem:[%s145 + $0x10] sm:$0xff] %vm223, %v217
      %227 = vst.msk [vmem:[%s145 + $0x18] sm:$0xff] %vm223, %v220
      %s228 = smul.u32 4, %s13
      %p229 = scmp.lt.s32.totalorder %s228, 15
      %s230 = scalar_select %p229, %s228, 15
      %s231 = smul.addr %s230, 8
      %s232 = scalar_lea.vmem %s2, %s231
      // Predicated region
      $region29: #{tpu_custom_call.1} parent=27 // pred_check
        %p233 = pneg %p78
      $region30: #{tpu_custom_call.1} parent=27 // pred_check_branch
        %235 = sbr.rel (%p233) target = $region32
      $region31: #{tpu_custom_call.1} parent=27 // pred_region
        %s236 = smul.u32 4, %s13
      $region32: #{tpu_custom_call.1} parent=27 // pred_fallthru
        _
    $region28: #{tpu_custom_call.1} parent=5 // pred_fallthru
      _
    %p237 = scmp.le.s32.totalorder 2, %s8
    // Predicated region
    $region33: #{tpu_custom_call.1} parent=5 // pred_check
      %p238 = pneg %p237
    $region34: #{tpu_custom_call.1} parent=5 // pred_check_branch
      %240 = sbr.rel (%p238) target = $region36
    $region35: #{tpu_custom_call.1} parent=5 // pred_region
      %s241 = ssub.s32 %s8, 2
      // Predicated region
      $region37: #{tpu_custom_call.1} parent=35 // pred_check
        %p242 = pneg %p84
      $region38: #{tpu_custom_call.1} parent=35 // pred_check_branch
        %244 = sbr.rel (%p242) target = $region40
      $region39: #{tpu_custom_call.1} parent=35 // pred_region
        %s245 = smul.u32 4, %s14
        %p246 = scmp.lt.s32.totalorder %s245, 15
        %s247 = scalar_select %p246, %s245, 15
        %s248 = smul.addr %s247, 8
        %s249 = scalar_lea.vmem %s2, %s248
      $region40: #{tpu_custom_call.1} parent=35 // pred_fallthru
        _
    $region36: #{tpu_custom_call.1} parent=5 // pred_fallthru
      _
  $region6: #{tpu_custom_call.1} parent=0 // loop_footer
    %s12 = sadd.s32 1, %s8
  $region7: #{tpu_custom_call.1} parent=0 // loop_footer_branch
    %7 = sbr.rel target = $region3
  $region8: #{tpu_custom_call.1} parent=0 // loop_exit
    _

</llo_original>
